<compile_context>
chip_gen: v7x
topology: tpu7x:2x2x1
jax: 0.10.0
libtpu: 0.0.40
codegen_flags: <defaults>
</compile_context>

<pallas_src>
import functools
import math

import jax
import jax.numpy as jnp
from jax import lax
from jax.experimental import pallas as pl
from jax.experimental.pallas import tpu as pltpu


# ----------------------------------------------------------------------------
# Hardware-aware configuration helpers
# ----------------------------------------------------------------------------
_VMEM_LIMIT_CACHE = None
_BUFFERED_OK = None


def _default_vmem_limit():
    """Generation-aware scoped-VMEM limit: ~80% of physical VMEM (v5e/v6e ~102 MiB,
    v7x ~51 MiB), leaving headroom for compiler scratch / spills."""
    global _VMEM_LIMIT_CACHE
    if _VMEM_LIMIT_CACHE is None:
        try:
            cap = int(pltpu.get_tpu_info().vmem_capacity_bytes)
            _VMEM_LIMIT_CACHE = max(32 * 1024 * 1024, int(cap * 0.8))
        except Exception:
            _VMEM_LIMIT_CACHE = 64 * 1024 * 1024   # safe everywhere
    return _VMEM_LIMIT_CACHE


def _probe_buffered_kernel(x_ref, o_ref):
    o_ref[...] = x_ref[...]


def _single_buffering_supported():
    """Probe once whether pipeline_mode=pl.Buffered(1) works end-to-end."""
    global _BUFFERED_OK
    if _BUFFERED_OK is None:
        ok = False
        if hasattr(pl, "Buffered"):
            try:
                spec = pl.BlockSpec((8, 128), lambda i: (0, 0),
                                    pipeline_mode=pl.Buffered(1))
                out = pl.pallas_call(
                    _probe_buffered_kernel,
                    out_shape=jax.ShapeDtypeStruct((8, 128), jnp.float32),
                    grid=(2,),
                    in_specs=[spec],
                    out_specs=pl.BlockSpec((8, 128), lambda i: (0, 0)),
                )(jnp.zeros((8, 128), jnp.float32))
                jax.block_until_ready(out)
                ok = True
            except Exception:
                ok = False
        _BUFFERED_OK = ok
    return _BUFFERED_OK


def _const_spec(shape):
    """BlockSpec for a grid-invariant operand (weights / LN params / biases):
    constant index map; single-buffered when the JAX version supports it."""
    index_map = lambda *_: (0,) * len(shape)
    if _single_buffering_supported():
        return pl.BlockSpec(shape, index_map, pipeline_mode=pl.Buffered(1))
    return pl.BlockSpec(shape, index_map)


# ----------------------------------------------------------------------------
# In-kernel helpers (f32 VPU math, bf16 MXU inputs)
# ----------------------------------------------------------------------------
def _layernorm_rows(x, gamma, beta, eps):
    """torch.nn.LayerNorm over the last dim (biased variance). x: f32 (R, D)."""
    mu = jnp.mean(x, axis=-1, keepdims=True)
    xc = x - mu
    var = jnp.mean(xc * xc, axis=-1, keepdims=True)
    return xc * lax.rsqrt(var + eps) * gamma + beta


def _erf(x):
    # Abramowitz & Stegun 7.1.26 rational approximation (|err| < 1.5e-7); the exp()
    # lands on the EUP.  TODO(synk): swap for lax.erf once Mosaic lowering confirmed.
    a1, a2, a3, a4, a5 = (0.254829592, -0.284496736, 1.421413741,
                          -1.453152027, 1.061405429)
    p = 0.3275911
    sgn = jnp.where(x >= 0.0, 1.0, -1.0)
    ax = jnp.abs(x)
    t = 1.0 / (1.0 + p * ax)
    poly = ((((a5 * t + a4) * t + a3) * t + a2) * t + a1) * t
    return sgn * (1.0 - poly * jnp.exp(-ax * ax))


def _gelu_exact(x):
    # nn.GELU() default (approximate='none'): 0.5*x*(1+erf(x/sqrt(2)))
    return 0.5 * x * (1.0 + _erf(x * 0.7071067811865476))


def _mha_core(q_f32, k, v, wo, ocat_ref, num_heads, head_dim, cdt):
    """Multi-head attention given projected q (f32, (TQ,D)) and k/v (cdt, (Lkv,D)).

    Per-head scores/softmax/PV; head outputs are written into the lane-concatenated
    VMEM scratch `ocat_ref` so the output projection is ONE (TQ,D)@(D,D) matmul."""
    scale = 1.0 / math.sqrt(head_dim)
    qc = q_f32.astype(cdt)
    for h in range(num_heads):                       # static unroll, H is small
        sl = slice(h * head_dim, (h + 1) * head_dim)
        s = lax.dot_general(qc[:, sl], k[:, sl], (((1,), (1,)), ((), ())),
                            preferred_element_type=jnp.float32) * scale
        m = jnp.max(s, axis=-1, keepdims=True)
        e = jnp.exp(s - m)                                               # EUP
        p = e * pl.reciprocal(jnp.sum(e, axis=-1, keepdims=True), approx=True)
        oh = jnp.dot(p.astype(cdt), v[:, sl], preferred_element_type=jnp.float32)
        ocat_ref[:, sl] = oh.astype(cdt)
    return jnp.dot(ocat_ref[...], wo, preferred_element_type=jnp.float32)


# ----------------------------------------------------------------------------
# Kernel A: K/V projection (optionally preceded by LayerNorm), fully parallel
# ----------------------------------------------------------------------------
def _kv_proj_kernel(cdt, src_ref, wk_ref, wv_ref, k_ref, v_ref):
    s = src_ref[0].astype(cdt)
    k_ref[0] = jnp.dot(s, wk_ref[...],
                       preferred_element_type=jnp.float32).astype(k_ref.dtype)
    v_ref[0] = jnp.dot(s, wv_ref[...],
                       preferred_element_type=jnp.float32).astype(v_ref.dtype)


def _kv_proj_ln_kernel(eps, cdt, src_ref, g_ref, b_ref, wk_ref, wv_ref, k_ref, v_ref):
    s = _layernorm_rows(src_ref[0].astype(jnp.float32),
                        g_ref[...], b_ref[...], eps).astype(cdt)
    k_ref[0] = jnp.dot(s, wk_ref[...],
                       preferred_element_type=jnp.float32).astype(k_ref.dtype)
    v_ref[0] = jnp.dot(s, wv_ref[...],
                       preferred_element_type=jnp.float32).astype(v_ref.dtype)


def project_kv(src, wk_t, wv_t, *, ln=None, eps=1e-5, s_tile=256,
               compute_dtype=jnp.bfloat16, vmem_limit_bytes=None):
    """K = [LN](src) @ Wk^T, V = [LN](src) @ Wv^T, written in compute_dtype."""
    B, Ls, Ds = src.shape
    D = wk_t.shape[1]
    ts = min(s_tile, Ls)
    ns = pl.cdiv(Ls, ts)
    if vmem_limit_bytes is None:
        vmem_limit_bytes = _default_vmem_limit()

    src_spec = pl.BlockSpec((1, ts, Ds), lambda b, j: (b, j, 0))
    if ln is None:
        kernel = functools.partial(_kv_proj_kernel, compute_dtype)
        in_specs = [src_spec, _const_spec((Ds, D)), _const_spec((Ds, D))]
        args = (src, wk_t, wv_t)
    else:
        gamma, beta = ln
        kernel = functools.partial(_kv_proj_ln_kernel, eps, compute_dtype)
        in_specs = [src_spec, _const_spec((1, Ds)), _const_spec((1, Ds)),
                    _const_spec((Ds, D)), _const_spec((Ds, D))]
        args = (src, gamma, beta, wk_t, wv_t)

    return pl.pallas_call(
        kernel,
        out_shape=(jax.ShapeDtypeStruct((B, Ls, D), compute_dtype),
                   jax.ShapeDtypeStruct((B, Ls, D), compute_dtype)),
        grid_spec=pltpu.PrefetchScalarGridSpec(
            num_scalar_prefetch=0,
            grid=(B, ns),
            in_specs=in_specs,
            out_specs=[pl.BlockSpec((1, ts, D), lambda b, j: (b, j, 0)),
                       pl.BlockSpec((1, ts, D), lambda b, j: (b, j, 0))],
        ),
        compiler_params=pltpu.CompilerParams(
            dimension_semantics=("parallel", "parallel"),
            vmem_limit_bytes=vmem_limit_bytes,
        ),
    )(*args)


# ----------------------------------------------------------------------------
# Kernel B: multi-head cross-attention  (Q proj + attn + single out proj)
# ----------------------------------------------------------------------------
def _cross_attn_kernel(num_heads, head_dim, cdt,
                       x_ref, k_ref, v_ref, wq_ref, wo_ref,
                       o_ref, ocat_scr):
    x = x_ref[0].astype(cdt)                                          # (TQ, D)
    q = jnp.dot(x, wq_ref[...], preferred_element_type=jnp.float32)  # (TQ, D) f32
    attn = _mha_core(q, k_ref[0], v_ref[0], wo_ref[...], ocat_scr,
                     num_heads, head_dim, cdt)
    o_ref[0] = attn.astype(o_ref.dtype)          # no residual (matches the module)


def cross_attention(x, k, v, wq_t, wo_t, num_heads, *, q_tile=256,
                    compute_dtype=jnp.bfloat16, out_dtype=None,
                    vmem_limit_bytes=None):
    B, Lq, D = x.shape
    Lkv = k.shape[1]
    assert D % num_heads == 0
    head_dim = D // num_heads
    tq = min(q_tile, Lq)
    nq = pl.cdiv(Lq, tq)
    out_dtype = x.dtype if out_dtype is None else out_dtype
    if vmem_limit_bytes is None:
        vmem_limit_bytes = _default_vmem_limit()
    kernel = functools.partial(_cross_attn_kernel, num_heads, head_dim,
                               compute_dtype)
    return pl.pallas_call(
        kernel,
        out_shape=jax.ShapeDtypeStruct((B, Lq, D), out_dtype),
        grid_spec=pltpu.PrefetchScalarGridSpec(
            num_scalar_prefetch=0,
            grid=(B, nq),
            in_specs=[
                pl.BlockSpec((1, tq, D), lambda b, i: (b, i, 0)),     # x query tile
                pl.BlockSpec((1, Lkv, D), lambda b, i: (b, 0, 0)),    # K (per batch)
                pl.BlockSpec((1, Lkv, D), lambda b, i: (b, 0, 0)),    # V (per batch)
                _const_spec((D, D)),                                  # Wq^T (bf16)
                _const_spec((D, D)),                                  # Wo^T (bf16)
            ],
            out_specs=pl.BlockSpec((1, tq, D), lambda b, i: (b, i, 0)),
            scratch_shapes=[pltpu.VMEM((tq, D), compute_dtype)],      # head concat
        ),
        compiler_params=pltpu.CompilerParams(
            dimension_semantics=("parallel", "parallel"),
            vmem_limit_bytes=vmem_limit_bytes,
        ),
    )(x, k, v, wq_t, wo_t)


# ----------------------------------------------------------------------------
# Kernel C: fused  LN2 + self-attn(Q path) + residual + LN3 + MLP(GELU) + residual
#   (self-attn K/V are precomputed by project_kv from LN2(x) of the full sequence)
# ----------------------------------------------------------------------------
def _sa_mlp_kernel(num_heads, head_dim, eps, cdt,
                   x_ref, k_ref, v_ref, g2_ref, b2_ref, wq_ref, wo_ref,
                   g3_ref, b3_ref, w1_ref, b1_ref, w2_ref, b2m_ref,
                   o_ref, ocat_scr):
    x = x_ref[0].astype(jnp.float32)                                  # (TQ, D)

    # LN2 (rows are independent -> per-tile recompute matches LN2 of full seq)
    bs = _layernorm_rows(x, g2_ref[...], b2_ref[...], eps).astype(cdt)
    q = jnp.dot(bs, wq_ref[...], preferred_element_type=jnp.float32)
    attn = _mha_core(q, k_ref[0], v_ref[0], wo_ref[...], ocat_scr,
                     num_heads, head_dim, cdt)
    x = x + attn

    # LN3 + MLP (Linear -> exact GELU -> Linear) + residual
    h = _layernorm_rows(x, g3_ref[...], b3_ref[...], eps).astype(cdt)
    h1 = jnp.dot(h, w1_ref[...], preferred_element_type=jnp.float32) + b1_ref[...]
    g = _gelu_exact(h1).astype(cdt)
    y = x + jnp.dot(g, w2_ref[...], preferred_element_type=jnp.float32) + b2m_ref[...]
    o_ref[0] = y.astype(o_ref.dtype)


def self_attn_mlp(x, k, v, p, num_heads, *, eps=1e-5, q_tile=256,
                  compute_dtype=jnp.bfloat16, out_dtype=None,
                  vmem_limit_bytes=None):
    B, Lq, D = x.shape
    Hm = p["mlp_w1"].shape[1]
    assert D % num_heads == 0
    head_dim = D // num_heads
    tq = min(q_tile, Lq)
    nq = pl.cdiv(Lq, tq)
    out_dtype = x.dtype if out_dtype is None else out_dtype
    if vmem_limit_bytes is None:
        vmem_limit_bytes = _default_vmem_limit()
    kernel = functools.partial(_sa_mlp_kernel, num_heads, head_dim, eps,
                               compute_dtype)
    return pl.pallas_call(
        kernel,
        out_shape=jax.ShapeDtypeStruct((B, Lq, D), out_dtype),
        grid_spec=pltpu.PrefetchScalarGridSpec(
            num_scalar_prefetch=0,
            grid=(B, nq),
            in_specs=[
                pl.BlockSpec((1, tq, D), lambda b, i: (b, i, 0)),     # x tile (Q + residual)
                pl.BlockSpec((1, Lq, D), lambda b, i: (b, 0, 0)),     # K_sa (per batch, bf16)
                pl.BlockSpec((1, Lq, D), lambda b, i: (b, 0, 0)),     # V_sa (per batch, bf16)
                _const_spec((1, D)),                                  # norm2 gamma (f32)
                _const_spec((1, D)),                                  # norm2 beta
                _const_spec((D, D)),                                  # sa Wq^T (bf16)
                _const_spec((D, D)),                                  # sa Wo^T (bf16)
                _const_spec((1, D)),                                  # norm3 gamma
                _const_spec((1, D)),                                  # norm3 beta
                _const_spec((D, Hm)),                                 # mlp W1^T (bf16)
                _const_spec((1, Hm)),                                 # mlp b1 (f32)
                _const_spec((Hm, D)),                                 # mlp W2^T (bf16)
                _const_spec((1, D)),                                  # mlp b2 (f32)
            ],
            out_specs=pl.BlockSpec((1, tq, D), lambda b, i: (b, i, 0)),
            scratch_shapes=[pltpu.VMEM((tq, D), compute_dtype)],      # head concat
        ),
        compiler_params=pltpu.CompilerParams(
            dimension_semantics=("parallel", "parallel"),
            vmem_limit_bytes=vmem_limit_bytes,
        ),
    )(x, k, v,
      p["norm2_g"], p["norm2_b"], p["sa_wq"], p["sa_wo"],
      p["norm3_g"], p["norm3_b"],
      p["mlp_w1"], p["mlp_b1"], p["mlp_w2"], p["mlp_b2"])


# ----------------------------------------------------------------------------
# Parameter creation (PyTorch layout) and one-time preparation for the kernels
# ----------------------------------------------------------------------------
def init_cross_attn_block_params(key, inner_dim, cond_dim, mlp_ratio=4.0,
                                 feedforward=False):
    """PyTorch-layout (out_features, in_features) weights; attn_bias=False."""
    hidden = int(inner_dim * mlp_ratio)
    ks = jax.random.split(key, 10)
    s = 0.1

    def w(k, shape):
        return jax.random.normal(k, shape, jnp.float32) * s

    p = {
        # cross-attn: kdim/vdim != embed_dim -> separate q/k/v projection weights
        "ca_wq": w(ks[0], (inner_dim, inner_dim)),
        "ca_wk": w(ks[1], (inner_dim, cond_dim)),
        "ca_wv": w(ks[2], (inner_dim, cond_dim)),
        "ca_wo": w(ks[3], (inner_dim, inner_dim)),
    }
    if feedforward:
        p.update({
            "norm2_g": jnp.ones((inner_dim,), jnp.float32),
            "norm2_b": jnp.zeros((inner_dim,), jnp.float32),
            "sa_wq": w(ks[4], (inner_dim, inner_dim)),
            "sa_wk": w(ks[5], (inner_dim, inner_dim)),
            "sa_wv": w(ks[6], (inner_dim, inner_dim)),
            "sa_wo": w(ks[7], (inner_dim, inner_dim)),
            "norm3_g": jnp.ones((inner_dim,), jnp.float32),
            "norm3_b": jnp.zeros((inner_dim,), jnp.float32),
            "mlp_w1": w(ks[8], (hidden, inner_dim)),
            "mlp_b1": jnp.zeros((hidden,), jnp.float32),
            "mlp_w2": w(ks[9], (inner_dim, hidden)),
            "mlp_b2": jnp.zeros((inner_dim,), jnp.float32),
        })
    return p


def prepare_cross_attn_block_params(raw, feedforward, compute_dtype=jnp.bfloat16):
    """One-time preprocessing: transpose PyTorch (out,in) weights to (in,out) and
    cast matmul weights to the MXU compute dtype; LN/bias params stay f32."""
    cdt = compute_dtype
    p = {
        "ca_wq": raw["ca_wq"].T.astype(cdt),
        "ca_wk": raw["ca_wk"].T.astype(cdt),
        "ca_wv": raw["ca_wv"].T.astype(cdt),
        "ca_wo": raw["ca_wo"].T.astype(cdt),
    }
    if feedforward:
        D = raw["norm2_g"].shape[0]
        Hm = raw["mlp_b1"].shape[0]
        p.update({
            "norm2_g": raw["norm2_g"].reshape(1, D).astype(jnp.float32),
            "norm2_b": raw["norm2_b"].reshape(1, D).astype(jnp.float32),
            "sa_wq": raw["sa_wq"].T.astype(cdt),
            "sa_wk": raw["sa_wk"].T.astype(cdt),
            "sa_wv": raw["sa_wv"].T.astype(cdt),
            "sa_wo": raw["sa_wo"].T.astype(cdt),
            "norm3_g": raw["norm3_g"].reshape(1, D).astype(jnp.float32),
            "norm3_b": raw["norm3_b"].reshape(1, D).astype(jnp.float32),
            "mlp_w1": raw["mlp_w1"].T.astype(cdt),
            "mlp_b1": raw["mlp_b1"].reshape(1, Hm).astype(jnp.float32),
            "mlp_w2": raw["mlp_w2"].T.astype(cdt),
            "mlp_b2": raw["mlp_b2"].reshape(1, D).astype(jnp.float32),
        })
    return p


# ----------------------------------------------------------------------------
# Module forwards
# ----------------------------------------------------------------------------
def cross_attn_block_forward(prepared, x, cond, num_heads, feedforward,
                             eps=1e-5, q_tile=256, kv_tile=256,
                             compute_dtype=jnp.bfloat16):
    out_dtype = x.dtype
    # norm_q / norm_k are nn.Identity(); cross-attn has NO residual in the module.
    k_ca, v_ca = project_kv(cond, prepared["ca_wk"], prepared["ca_wv"],
                            s_tile=kv_tile, compute_dtype=compute_dtype)
    x = cross_attention(
        x, k_ca, v_ca, prepared["ca_wq"], prepared["ca_wo"], num_heads,
        q_tile=q_tile, compute_dtype=compute_dtype,
        # keep the inter-kernel activation in bf16 when the feedforward tail follows
        out_dtype=(compute_dtype if feedforward else out_dtype))
    if feedforward:
        k_sa, v_sa = project_kv(x, prepared["sa_wk"], prepared["sa_wv"],
                                ln=(prepared["norm2_g"], prepared["norm2_b"]),
                                eps=eps, s_tile=kv_tile,
                                compute_dtype=compute_dtype)
        x = self_attn_mlp(x, k_sa, v_sa, prepared, num_heads, eps=eps,
                          q_tile=q_tile, compute_dtype=compute_dtype,
                          out_dtype=out_dtype)
    return x


def init_decoder_cross_attn_params(key, query_dim, context_dim, num_heads,
                                   mlp=False, extra_cond_dim=None):
    k1, k2 = jax.random.split(key)
    raw = {"cross_attn": init_cross_attn_block_params(
        k1, query_dim, context_dim, mlp_ratio=4.0, feedforward=mlp)}
    if extra_cond_dim is not None:
        raw["cross_attn_color"] = init_cross_attn_block_params(
            k2, query_dim, extra_cond_dim, mlp_ratio=4.0, feedforward=False)
    return raw


def prepare_decoder_cross_attn_params(raw, mlp=False, compute_dtype=jnp.bfloat16):
    prepared = {"cross_attn": prepare_cross_attn_block_params(
        raw["cross_attn"], mlp, compute_dtype)}
    if "cross_attn_color" in raw:
        prepared["cross_attn_color"] = prepare_cross_attn_block_params(
            raw["cross_attn_color"], False, compute_dtype)
    return prepared


def decoder_cross_attn_forward(prepared, pcl_query, pcl_latent, num_heads,
                               mlp=False, image_feats=None,
                               compute_dtype=jnp.bfloat16):
    """DecoderCrossAttn.forward.  `image_feats` corresponds to
    decode_with_extra_info={'type': 'dinov2p14_feat'} (features supplied directly).
    Encoder-backed variants (Dinov2Wrapper / resnet18 + resize) are out of scope."""
    out = cross_attn_block_forward(prepared["cross_attn"], pcl_query, pcl_latent,
                                   num_heads, feedforward=mlp,
                                   compute_dtype=compute_dtype)
    if image_feats is not None:
        out_dict = {"coarse": out}
        out_dict["fine"] = cross_attn_block_forward(
            prepared["cross_attn_color"], out, image_feats, num_heads,
            feedforward=False, compute_dtype=compute_dtype)
        return out_dict
    return out


# ----------------------------------------------------------------------------
# Pure-JAX f32 reference (PyTorch semantics) for a loose numerical sanity check
# ----------------------------------------------------------------------------
def _mha_ref(q_in, k_in, v_in, wq, wk, wv, wo, num_heads):
    B, Lq, D = q_in.shape
    hd = D // num_heads

    def split(t):
        return t.reshape(B, -1, num_heads, hd).transpose(0, 2, 1, 3)

    qh = split(q_in @ wq.T)
    kh = split(k_in @ wk.T)
    vh = split(v_in @ wv.T)
    s = jnp.einsum("bhqd,bhkd->bhqk", qh, kh) / math.sqrt(hd)
    p = jax.nn.softmax(s, axis=-1)
    o = jnp.einsum("bhqk,bhkd->bhqd", p, vh)
    return o.transpose(0, 2, 1, 3).reshape(B, Lq, D) @ wo.T


def _ln_ref(x, g, b, eps=1e-5):
    mu = x.mean(-1, keepdims=True)
    var = ((x - mu) ** 2).mean(-1, keepdims=True)
    return (x - mu) / jnp.sqrt(var + eps) * g + b


def _block_ref(raw, x, cond, num_heads, feedforward, eps=1e-5):
    x = _mha_ref(x, cond, cond, raw["ca_wq"], raw["ca_wk"], raw["ca_wv"],
                 raw["ca_wo"], num_heads)
    if feedforward:
        b = _ln_ref(x, raw["norm2_g"], raw["norm2_b"], eps)
        x = x + _mha_ref(b, b, b, raw["sa_wq"], raw["sa_wk"], raw["sa_wv"],
                         raw["sa_wo"], num_heads)
        h = _ln_ref(x, raw["norm3_g"], raw["norm3_b"], eps)
        h = jax.nn.gelu(h @ raw["mlp_w1"].T + raw["mlp_b1"], approximate=False)
        x = x + h @ raw["mlp_w2"].T + raw["mlp_b2"]
    return x


if __name__ == "__main__":
    B, Lq, Lk = 2, 8, 12
    query_dim, context_dim, num_heads = 32, 16, 4
    extra_cond_dim, Lk2 = 24, 10

    key = jax.random.PRNGKey(0)
    kx, kc, ke, kp1, kp2 = jax.random.split(key, 5)
    pcl_query = jax.random.normal(kx, (B, Lq, query_dim), jnp.float32)
    pcl_latent = jax.random.normal(kc, (B, Lk, context_dim), jnp.float32)
    image_feats = jax.random.normal(ke, (B, Lk2, extra_cond_dim), jnp.float32)

    # 1) default DecoderCrossAttn: mlp=False, decode_with_extra_info=None
    raw0 = init_decoder_cross_attn_params(kp1, query_dim, context_dim, num_heads,
                                          mlp=False)
    prep0 = prepare_decoder_cross_attn_params(raw0, mlp=False)
    out0 = decoder_cross_attn_forward(prep0, pcl_query, pcl_latent, num_heads,
                                      mlp=False)
    jax.block_until_ready(out0)
    assert out0.shape == (B, Lq, query_dim)
    ref0 = _block_ref(raw0["cross_attn"], pcl_query, pcl_latent, num_heads, False)
    err0 = float(jnp.max(jnp.abs(out0 - ref0)))
    assert err0 < 1e-1, f"cross-attn mismatch vs f32 reference: {err0}"

    # 2) mlp=True (feedforward CrossAttnBlock) + 'dinov2p14_feat' extra conditioning
    raw1 = init_decoder_cross_attn_params(kp2, query_dim, context_dim, num_heads,
                                          mlp=True, extra_cond_dim=extra_cond_dim)
    prep1 = prepare_decoder_cross_attn_params(raw1, mlp=True)
    out1 = decoder_cross_attn_forward(prep1, pcl_query, pcl_latent, num_heads,
                                      mlp=True, image_feats=image_feats)
    jax.block_until_ready(out1)
    assert out1["coarse"].shape == (B, Lq, query_dim)
    assert out1["fine"].shape == (B, Lq, query_dim)
    ref_coarse = _block_ref(raw1["cross_attn"], pcl_query, pcl_latent,
                            num_heads, True)
    ref_fine = _block_ref(raw1["cross_attn_color"], ref_coarse, image_feats,
                          num_heads, False)
    errc = float(jnp.max(jnp.abs(out1["coarse"] - ref_coarse)))
    errf = float(jnp.max(jnp.abs(out1["fine"] - ref_fine)))
    assert errc < 1e-1, f"coarse mismatch vs f32 reference: {errc}"
    assert errf < 1e-1, f"fine mismatch vs f32 reference: {errf}"

    print("KERNEL_OK")
</pallas_src>

<mosaic_0001>
module attributes {stable_mosaic.version = 11 : i64} {
  func.func @_probe_buffered_kernel(%arg0: i32, %arg1: memref<8x128xf32, #tpu.memory_space<vmem>>, %arg2: memref<8x128xf32, #tpu.memory_space<vmem>>) attributes {dimension_semantics = [#tpu.dimension_semantics<arbitrary>], iteration_bounds = array<i64: 2>, scalar_prefetch = 0 : i64, scratch_operands = 0 : i64, tpu.core_type = #tpu.core_type<tc>, window_params = [{pipeline_mode = #tpu.pipeline_mode<synchronous>, transform_indices = @transform_0, window_bounds = array<i64: 8, 128>}, {pipeline_mode = #tpu.pipeline_mode<synchronous>, transform_indices = @transform_1, window_bounds = array<i64: 8, 128>}]} {
    %c0 = arith.constant 0 : index
    %c0_0 = arith.constant 0 : index
    %0 = vector.load %arg1[%c0, %c0_0] : memref<8x128xf32, #tpu.memory_space<vmem>>, vector<8x128xf32>
    %c0_1 = arith.constant 0 : index
    %c0_2 = arith.constant 0 : index
    %1 = vector.load %arg2[%c0_1, %c0_2] : memref<8x128xf32, #tpu.memory_space<vmem>>, vector<8x128xf32>
    tpu.vector_store %arg2[%c0_1, %c0_2], %0 {strides = array<i32>} : memref<8x128xf32, #tpu.memory_space<vmem>>, vector<8x128xf32>,
    return
  }
  func.func @transform_0(%arg0: i32) -> (i32, i32) {
    %c0_i32 = arith.constant 0 : i32
    %c0_i32_0 = arith.constant 0 : i32
    %c0_i32_1 = arith.constant 0 : i32
    return %c0_i32, %c0_i32_0 : i32, i32
  }
  func.func @transform_1(%arg0: i32) -> (i32, i32) {
    %c0_i32 = arith.constant 0 : i32
    %c0_i32_0 = arith.constant 0 : i32
    %c0_i32_1 = arith.constant 0 : i32
    return %c0_i32, %c0_i32_0 : i32, i32
  }
}

module attributes {stable_mosaic.version = 11 : i64} {
  func.func @_kv_proj_kernel(%arg0: i32, %arg1: i32, %arg2: memref<1x12x16xf32, #tpu.memory_space<vmem>>, %arg3: memref<16x32xbf16, #tpu.memory_space<vmem>>, %arg4: memref<16x32xbf16, #tpu.memory_space<vmem>>, %arg5: memref<1x12x32xbf16, #tpu.memory_space<vmem>>, %arg6: memref<1x12x32xbf16, #tpu.memory_space<vmem>>) attributes {dimension_semantics = [#tpu.dimension_semantics<parallel>, #tpu.dimension_semantics<parallel>], iteration_bounds = array<i64: 2, 1>, scalar_prefetch = 0 : i64, scratch_operands = 0 : i64, tpu.core_type = #tpu.core_type<tc>, window_params = [{transform_indices = @transform_0, window_bounds = array<i64: 1, 12, 16>}, {pipeline_mode = #tpu.pipeline_mode<synchronous>, transform_indices = @transform_1, window_bounds = array<i64: 16, 32>}, {pipeline_mode = #tpu.pipeline_mode<synchronous>, transform_indices = @transform_2, window_bounds = array<i64: 16, 32>}, {transform_indices = @transform_3, window_bounds = array<i64: 1, 12, 32>}, {transform_indices = @transform_4, window_bounds = array<i64: 1, 12, 32>}]} {
    %c0 = arith.constant 0 : index
    %c0_0 = arith.constant 0 : index
    %c0_1 = arith.constant 0 : index
    %0 = vector.load %arg2[%c0, %c0_0, %c0_1] : memref<1x12x16xf32, #tpu.memory_space<vmem>>, vector<1x12x16xf32>
    %1 = vector.shape_cast %0 : vector<1x12x16xf32> to vector<12x16xf32>
    %2 = arith.truncf %1 : vector<12x16xf32> to vector<12x16xbf16>
    %c0_2 = arith.constant 0 : index
    %c0_3 = arith.constant 0 : index
    %3 = vector.load %arg3[%c0_2, %c0_3] : memref<16x32xbf16, #tpu.memory_space<vmem>>, vector<16x32xbf16>
    %cst = arith.constant dense<0.000000e+00> : vector<12x32xf32>
    %4 = tpu.matmul %2, %3, %cst {dimension_numbers = #tpu.dot_dimension_numbers<[1], [0], [0], [1], [0, 0, 1, 1], [], []>} : vector<12x16xbf16>, vector<16x32xbf16>, vector<12x32xf32> -> vector<12x32xf32>
    %5 = arith.truncf %4 : vector<12x32xf32> to vector<12x32xbf16>
    %c0_4 = arith.constant 0 : index
    %c0_5 = arith.constant 0 : index
    %c0_6 = arith.constant 0 : index
    %6 = vector.load %arg5[%c0_4, %c0_5, %c0_6] : memref<1x12x32xbf16, #tpu.memory_space<vmem>>, vector<1x12x32xbf16>
    %7 = vector.shape_cast %6 : vector<1x12x32xbf16> to vector<12x32xbf16>
    %8 = vector.shape_cast %5 : vector<12x32xbf16> to vector<1x12x32xbf16>
    tpu.vector_store %arg5[%c0_4, %c0_5, %c0_6], %8 {strides = array<i32>} : memref<1x12x32xbf16, #tpu.memory_space<vmem>>, vector<1x12x32xbf16>,
    %c0_7 = arith.constant 0 : index
    %c0_8 = arith.constant 0 : index
    %9 = vector.load %arg4[%c0_7, %c0_8] : memref<16x32xbf16, #tpu.memory_space<vmem>>, vector<16x32xbf16>
    %cst_9 = arith.constant dense<0.000000e+00> : vector<12x32xf32>
    %10 = tpu.matmul %2, %9, %cst_9 {dimension_numbers = #tpu.dot_dimension_numbers<[1], [0], [0], [1], [0, 0, 1, 1], [], []>} : vector<12x16xbf16>, vector<16x32xbf16>, vector<12x32xf32> -> vector<12x32xf32>
    %11 = arith.truncf %10 : vector<12x32xf32> to vector<12x32xbf16>
    %c0_10 = arith.constant 0 : index
    %c0_11 = arith.constant 0 : index
    %c0_12 = arith.constant 0 : index
    %12 = vector.load %arg6[%c0_10, %c0_11, %c0_12] : memref<1x12x32xbf16, #tpu.memory_space<vmem>>, vector<1x12x32xbf16>
    %13 = vector.shape_cast %12 : vector<1x12x32xbf16> to vector<12x32xbf16>
    %14 = vector.shape_cast %11 : vector<12x32xbf16> to vector<1x12x32xbf16>
    tpu.vector_store %arg6[%c0_10, %c0_11, %c0_12], %14 {strides = array<i32>} : memref<1x12x32xbf16, #tpu.memory_space<vmem>>, vector<1x12x32xbf16>,
    return
  }
  func.func @transform_0(%arg0: i32, %arg1: i32) -> (i32, i32, i32) {
    %c0_i32 = arith.constant 0 : i32
    %c0_i32_0 = arith.constant 0 : i32
    return %arg0, %arg1, %c0_i32 : i32, i32, i32
  }
  func.func @transform_1(%arg0: i32, %arg1: i32) -> (i32, i32) {
    %c0_i32 = arith.constant 0 : i32
    %c0_i32_0 = arith.constant 0 : i32
    %c0_i32_1 = arith.constant 0 : i32
    return %c0_i32, %c0_i32_0 : i32, i32
  }
  func.func @transform_2(%arg0: i32, %arg1: i32) -> (i32, i32) {
    %c0_i32 = arith.constant 0 : i32
    %c0_i32_0 = arith.constant 0 : i32
    %c0_i32_1 = arith.constant 0 : i32
    return %c0_i32, %c0_i32_0 : i32, i32
  }
  func.func @transform_3(%arg0: i32, %arg1: i32) -> (i32, i32, i32) {
    %c0_i32 = arith.constant 0 : i32
    %c0_i32_0 = arith.constant 0 : i32
    return %arg0, %arg1, %c0_i32 : i32, i32, i32
  }
  func.func @transform_4(%arg0: i32, %arg1: i32) -> (i32, i32, i32) {
    %c0_i32 = arith.constant 0 : i32
    %c0_i32_0 = arith.constant 0 : i32
    return %arg0, %arg1, %c0_i32 : i32, i32, i32
  }
}

</mosaic_0001>

<llo_original>
// kernel: tpu_custom_call.1
$region0: #{tpu_custom_call.1}
  #allocation0 [shape = 'u32[]', space=smem, size = 0x4, offset = 0x4, fixed_abs, tag = 'smem constant byte address 0x4 - core index']
  #allocation1 [shape = 'u32[144,128]{1,0:T(1,128)}', space=vmem, size = 0x12000, scoped, tag = 'internal scratch']
  %s0 = inlined_call_operand.hbm [shape: f32[8,128], index: 0, kind: input, shape index: {}]
  %s1 = inlined_call_operand.hbm [shape: f32[8,128], index: 1, kind: output, shape index: {}]
  %s2 = sld [smem:[#allocation0]]
  $region41: #{tpu_custom_call.1} parent=0
    _
  %s4 = ssub.s32 1, %s2
  %s5 = scalar_select 0, %s4, %s2
  $region1: #{tpu_custom_call.1} parent=0
    #allocation2 [shape = 'u8[4096]{0}', space=vmem, size = 0x1000, scoped, tag = 'input window, operand 0, single buffered']
    #allocation3 [shape = 's32[2]{0}', space=sflag, size = 0x8, scoped, tag = 'scoped memory for tpu_custom_call.1']
    #allocation4 [shape = 's32[2]{0}', space=sflag, size = 0x8, scoped, tag = 'scoped memory for tpu_custom_call.1']
    #allocation5 [shape = 'u8[4096]{0}', space=vmem, size = 0x1000, scoped, tag = 'output window, operand 0, single buffered']
    %6 = vsyncpa [#allocation3], 0
    %7 = vsyncpa [#allocation4], 0
    loop: start=0, step=1, limit=4
    $region2: #{tpu_custom_call.1} parent=1 // loop_pre_header
      _
    $region3: #{tpu_custom_call.1} parent=1 // loop_header
      %s9 = sphi 0, %s13
      %p10 = scmp.ge.s32.totalorder %s9, 4
      %s17 = sphi 0, %s17
      %s19 = sphi 0, %s17
      %s20 = sphi 0, %s19
      %s34 = sphi 0, %s20
      %s38 = sphi 0, %s38
      %s40 = sphi 0, %s38
      %s41 = sphi 0, %s40
      %s55 = sphi 0, %s41
    $region4: #{tpu_custom_call.1} parent=1 // loop_header_branch
      %12 = sbr.rel (%p10) target = $region8
    $region5: #{tpu_custom_call.1} parent=1 // loop_body
      %s14 = ssub.s32 %s9, 1
      %s15 = ssub.s32 %s9, 2
      %s16 = sadd.s32 %s9, 1
      %s18 = sadd.s32 %s17, 1
      %p21 = scmp.eq.s32.totalorder %s9, 1
      %p22 = scmp.ne.s32.totalorder %s17, %s19
      %p23 = scmp.eq.s32.totalorder %s9, 0
      %p24 = por %p22, %p23
      %p25 = scmp.ne.s32.totalorder %s17, %s19
      %p26 = scmp.eq.s32.totalorder %s14, 1
      %p27 = por %p25, %p26
      %p28 = scmp.ne.s32.totalorder %s19, %s20
      %p29 = scmp.eq.s32.totalorder %s14, 0
      %p30 = por %p28, %p29
      %p31 = scmp.ne.s32.totalorder %s19, %s20
      %p32 = scmp.eq.s32.totalorder %s15, 1
      %p33 = por %p31, %p32
      %p35 = scmp.ne.s32.totalorder %s20, %s34
      %p36 = scmp.eq.s32.totalorder %s15, 0
      %p37 = por %p35, %p36
      %s39 = sadd.s32 %s38, 1
      %p42 = scmp.eq.s32.totalorder %s9, 1
      %p43 = scmp.ne.s32.totalorder %s38, %s40
      %p44 = scmp.eq.s32.totalorder %s9, 0
      %p45 = por %p43, %p44
      %p46 = scmp.ne.s32.totalorder %s38, %s40
      %p47 = scmp.eq.s32.totalorder %s14, 1
      %p48 = por %p46, %p47
      %p49 = scmp.ne.s32.totalorder %s40, %s41
      %p50 = scmp.eq.s32.totalorder %s14, 0
      %p51 = por %p49, %p50
      %p52 = scmp.ne.s32.totalorder %s40, %s41
      %p53 = scmp.eq.s32.totalorder %s15, 1
      %p54 = por %p52, %p53
      %p56 = scmp.ne.s32.totalorder %s41, %s55
      %p57 = scmp.eq.s32.totalorder %s15, 0
      %p58 = por %p56, %p57
      %p59 = scmp.le.s32.totalorder 1, %s9
      %p60 = scmp.lt.s32.totalorder %s9, 3
      %p61 = pnand %p59, %p60
      %p62 = pneg %p61
      // Predicated region
      $region9: #{tpu_custom_call.1} parent=5 // pred_check
        _
      $region10: #{tpu_custom_call.1} parent=5 // pred_check_branch
        %64 = sbr.rel (%p61) target = $region12
      $region11: #{tpu_custom_call.1} parent=5 // pred_region
        %s65 = ssub.s32 %s9, 1
        // Predicated region
        $region13: #{tpu_custom_call.1} parent=11 // pred_check
          %p66 = pneg %p30
        $region14: #{tpu_custom_call.1} parent=11 // pred_check_branch
          %68 = sbr.rel (%p66) target = $region16
        $region15: #{tpu_custom_call.1} parent=11 // pred_region
          %s70 = ssub.s32 128, 128
          %71 = vsyncadd [#allocation3], %s70
          %s73 = sshll.u32 [#allocation2], 4
          %s74 = int_to_ptr.vmem [resolvable:$true] %s73
          %76 = dma.hbm_to_vmem [thread:$0]  %s0, 128, %s74, [#allocation3]
        $region16: #{tpu_custom_call.1} parent=11 // pred_fallthru
          _
      $region12: #{tpu_custom_call.1} parent=5 // pred_fallthru
        _
      %p77 = scmp.lt.s32.totalorder %s9, 2
      // Predicated region
      $region17: #{tpu_custom_call.1} parent=5 // pred_check
        %p78 = pneg %p77
      $region18: #{tpu_custom_call.1} parent=5 // pred_check_branch
        %80 = sbr.rel (%p78) target = $region20
      $region19: #{tpu_custom_call.1} parent=5 // pred_region
        _
      $region20: #{tpu_custom_call.1} parent=5 // pred_fallthru
        _
      %p81 = scmp.le.s32.totalorder 1, %s9
      %p82 = scmp.lt.s32.totalorder %s9, 3
      %p83 = pnand %p81, %p82
      %p84 = pneg %p83
      // Predicated region
      $region21: #{tpu_custom_call.1} parent=5 // pred_check
        _
      $region22: #{tpu_custom_call.1} parent=5 // pred_check_branch
        %86 = sbr.rel (%p83) target = $region24
      $region23: #{tpu_custom_call.1} parent=5 // pred_region
        %s87 = ssub.s32 %s9, 1
        // Predicated region
        $region25: #{tpu_custom_call.1} parent=23 // pred_check
          %p88 = pneg %p30
        $region26: #{tpu_custom_call.1} parent=23 // pred_check_branch
          %90 = sbr.rel (%p88) target = $region28
        $region27: #{tpu_custom_call.1} parent=23 // pred_region
          %91 = dma.done [#allocation3], 128
        $region28: #{tpu_custom_call.1} parent=23 // pred_fallthru
          _
        %p92 = pneg %p30
        %p93 = pneg %p27
        %p94 = pneg %p51
        %p95 = pneg %p48
        %v96 = vld [vmem:[#allocation2] sm:$0xff]
        %97 = vst [vmem:[#allocation5] sm:$0xff] %v96
        // Predicated region
        $region29: #{tpu_custom_call.1} parent=23 // pred_check
          %p98 = pneg %p48
        $region30: #{tpu_custom_call.1} parent=23 // pred_check_branch
          %100 = sbr.rel (%p98) target = $region32
        $region31: #{tpu_custom_call.1} parent=23 // pred_region
          %s102 = ssub.s32 128, 128
          %103 = vsyncadd [#allocation4], %s102
          %s105 = sshll.u32 [#allocation5], 4
          %s106 = int_to_ptr.vmem [resolvable:$true] %s105
          %108 = dma.vmem_to_hbm [thread:$0]  %s106, 128, %s1, [#allocation4]
        $region32: #{tpu_custom_call.1} parent=23 // pred_fallthru
          _
        // Predicated region
        $region33: #{tpu_custom_call.1} parent=23 // pred_check
          %p109 = pneg %p48
        $region34: #{tpu_custom_call.1} parent=23 // pred_check_branch
          %111 = sbr.rel (%p109) target = $region36
        $region35: #{tpu_custom_call.1} parent=23 // pred_region
          %112 = dma.done [#allocation4], 128
        $region36: #{tpu_custom_call.1} parent=23 // pred_fallthru
          _
      $region24: #{tpu_custom_call.1} parent=5 // pred_fallthru
        _
      %p113 = scmp.le.s32.totalorder 2, %s9
      // Predicated region
      $region37: #{tpu_custom_call.1} parent=5 // pred_check
        %p114 = pneg %p113
      $region38: #{tpu_custom_call.1} parent=5 // pred_check_branch
        %116 = sbr.rel (%p114) target = $region40
      $region39: #{tpu_custom_call.1} parent=5 // pred_region
        %s117 = ssub.s32 %s9, 2
      $region40: #{tpu_custom_call.1} parent=5 // pred_fallthru
        _
    $region6: #{tpu_custom_call.1} parent=1 // loop_footer
      %s13 = sadd.s32 1, %s9
    $region7: #{tpu_custom_call.1} parent=1 // loop_footer_branch
      %8 = sbr.rel target = $region3
    $region8: #{tpu_custom_call.1} parent=1 // loop_exit
      _
    %118 = vsyncpa [#allocation3], 1
    %s119 = scalar_lea.sflag [#allocation3], 1
    %120 = vsyncpa %s119, 1
    %121 = vsyncpa [#allocation4], 1
    %s122 = scalar_lea.sflag [#allocation4], 1
    %123 = vsyncpa %s122, 1

// kernel: tpu_custom_call.1
$region0: #{tpu_custom_call.1}
  #allocation0 [shape = 'u32[]', space=smem, size = 0x4, offset = 0x4, fixed_abs, tag = 'smem constant byte address 0x4 - core index']
  #allocation1 [shape = 'u32[144,128]{1,0:T(1,128)}', space=vmem, size = 0x12000, scoped, tag = 'internal scratch']
  %s0 = inlined_call_operand.hbm [shape: f32[2,12,16], index: 0, kind: input, shape index: {}]
  %s1 = inlined_call_operand.hbm [shape: bf16[16,32], index: 1, kind: input, shape index: {}]
  %s2 = inlined_call_operand.hbm [shape: bf16[16,32], index: 2, kind: input, shape index: {}]
  %s3 = inlined_call_operand.hbm [shape: bf16[2,12,32], index: 3, kind: output, shape index: {0}]
  %s4 = inlined_call_operand.hbm [shape: bf16[2,12,32], index: 4, kind: output, shape index: {1}]
  %5 = xla_tuple %s3, %s4
  %s6 = sld [smem:[#allocation0]]
  $region65: #{tpu_custom_call.1} parent=0
    _
  %s8 = ssub.s32 1, %s6
  %s9 = scalar_select 0, %s8, %s6
  $region1: #{tpu_custom_call.1} parent=0
    #allocation2 [shape = 'u8[16384]{0}', space=vmem, size = 0x4000, scoped, tag = 'input window, operand 0']
    #allocation3 [shape = 's32[2]{0}', space=sflag, size = 0x8, scoped, tag = 'scoped memory for tpu_custom_call.1']
    #allocation4 [shape = 's32[2]{0}', space=sflag, size = 0x8, scoped, tag = 'scoped memory for tpu_custom_call.1']
    #allocation5 [shape = 'u8[4096]{0}', space=vmem, size = 0x1000, scoped, tag = 'input window, operand 1, single buffered']
    #allocation6 [shape = 's32[1]{0}', space=sflag, size = 0x4, scoped, tag = 'scoped memory for tpu_custom_call.1']
    #allocation7 [shape = 'u8[4096]{0}', space=vmem, size = 0x1000, scoped, tag = 'input window, operand 2, single buffered']
    #allocation8 [shape = 'u8[8192]{0}', space=vmem, size = 0x2000, scoped, tag = 'output window, operand 0']
    #allocation9 [shape = 'u8[8192]{0}', space=vmem, size = 0x2000, scoped, tag = 'output window, operand 1']
    #allocation10 [shape = 's32[2]{0}', space=sflag, size = 0x8, scoped, tag = 'scoped memory for tpu_custom_call.1']
    %10 = vsyncpa [#allocation3], 0
    %s11 = scalar_lea.sflag [#allocation3], 1
    %12 = vsyncpa %s11, 0
    %13 = vsyncpa [#allocation6], 0
    %14 = vsyncpa [#allocation4], 0
    %s15 = scalar_lea.sflag [#allocation4], 1
    %16 = vsyncpa %s15, 0
    %17 = vsyncpa [#allocation10], 0
    %s18 = scalar_lea.sflag [#allocation10], 1
    %19 = vsyncpa %s18, 0
    loop: start=0, step=1, limit=4
    $region2: #{tpu_custom_call.1} parent=1 // loop_pre_header
      _
    $region3: #{tpu_custom_call.1} parent=1 // loop_header
      %s21 = sphi 0, %s25
      %p22 = scmp.ge.s32.totalorder %s21, 4
      %s28 = sphi 0, %s40
      %s29 = sphi 0, %s36
      %s30 = sphi 0, %s28
      %s31 = sphi 0, %s29
      %s32 = sphi 0, %s30
      %s33 = sphi 0, %s31
      %s45 = sphi 0, %s47
      %s48 = sphi 0, %s45
      %s49 = sphi 0, %s48
      %s65 = sphi 0, %s49
      %s69 = sphi 0, %s69
      %s71 = sphi 0, %s69
      %s72 = sphi 0, %s71
      %s86 = sphi 0, %s72
      %s90 = sphi 0, %s90
      %s92 = sphi 0, %s90
      %s93 = sphi 0, %s92
      %s107 = sphi 0, %s93
      %s115 = sphi 0, %s117
      %s118 = sphi 0, %s115
      %s119 = sphi 0, %s118
      %s135 = sphi 0, %s119
      %s143 = sphi 0, %s145
      %s146 = sphi 0, %s143
      %s147 = sphi 0, %s146
      %s163 = sphi 0, %s147
    $region4: #{tpu_custom_call.1} parent=1 // loop_header_branch
      %24 = sbr.rel (%p22) target = $region8
    $region5: #{tpu_custom_call.1} parent=1 // loop_body
      %s26 = ssub.s32 %s21, 1
      %s27 = ssub.s32 %s21, 2
      %s34 = sadd.s32 1, %s29
      %p35 = scmp.ge.s32.totalorder %s34, 1
      %s36 = scalar_select %p35, 0, %s34
      %s37 = sadd.s32 1, %s28
      %s38 = scalar_select %p35, %s37, %s28
      %p39 = scmp.ge.s32.totalorder %s38, 2
      %s40 = scalar_select %p39, 0, %s38
      %s41 = ssub.s32 %s28, %s40
      %s42 = ssub.s32 %s29, %s36
      %s43 = sor.u32 %s41, %s42
      %p44 = scmp.eq.s32.totalorder %s43, 0
      %s46 = sadd.s32 %s45, 1
      %s47 = scalar_select %p44, %s45, %s46
      %p50 = pneg %p44
      %p51 = scmp.eq.s32.totalorder %s21, 1
      %p52 = por %p50, %p51
      %p53 = scmp.ne.s32.totalorder %s45, %s48
      %p54 = scmp.eq.s32.totalorder %s21, 0
      %p55 = por %p53, %p54
      %p56 = scmp.ne.s32.totalorder %s45, %s48
      %p57 = scmp.eq.s32.totalorder %s26, 1
      %p58 = por %p56, %p57
      %p59 = scmp.ne.s32.totalorder %s48, %s49
      %p60 = scmp.eq.s32.totalorder %s26, 0
      %p61 = por %p59, %p60
      %p62 = scmp.ne.s32.totalorder %s48, %s49
      %p63 = scmp.eq.s32.totalorder %s27, 1
      %p64 = por %p62, %p63
      %p66 = scmp.ne.s32.totalorder %s49, %s65
      %p67 = scmp.eq.s32.totalorder %s27, 0
      %p68 = por %p66, %p67
      %s70 = sadd.s32 %s69, 1
      %p73 = scmp.eq.s32.totalorder %s21, 1
      %p74 = scmp.ne.s32.totalorder %s69, %s71
      %p75 = scmp.eq.s32.totalorder %s21, 0
      %p76 = por %p74, %p75
      %p77 = scmp.ne.s32.totalorder %s69, %s71
      %p78 = scmp.eq.s32.totalorder %s26, 1
      %p79 = por %p77, %p78
      %p80 = scmp.ne.s32.totalorder %s71, %s72
      %p81 = scmp.eq.s32.totalorder %s26, 0
      %p82 = por %p80, %p81
      %p83 = scmp.ne.s32.totalorder %s71, %s72
      %p84 = scmp.eq.s32.totalorder %s27, 1
      %p85 = por %p83, %p84
      %p87 = scmp.ne.s32.totalorder %s72, %s86
      %p88 = scmp.eq.s32.totalorder %s27, 0
      %p89 = por %p87, %p88
      %s91 = sadd.s32 %s90, 1
      %p94 = scmp.eq.s32.totalorder %s21, 1
      %p95 = scmp.ne.s32.totalorder %s90, %s92
      %p96 = scmp.eq.s32.totalorder %s21, 0
      %p97 = por %p95, %p96
      %p98 = scmp.ne.s32.totalorder %s90, %s92
      %p99 = scmp.eq.s32.totalorder %s26, 1
      %p100 = por %p98, %p99
      %p101 = scmp.ne.s32.totalorder %s92, %s93
      %p102 = scmp.eq.s32.totalorder %s26, 0
      %p103 = por %p101, %p102
      %p104 = scmp.ne.s32.totalorder %s92, %s93
      %p105 = scmp.eq.s32.totalorder %s27, 1
      %p106 = por %p104, %p105
      %p108 = scmp.ne.s32.totalorder %s93, %s107
      %p109 = scmp.eq.s32.totalorder %s27, 0
      %p110 = por %p108, %p109
      %s111 = ssub.s32 %s28, %s40
      %s112 = ssub.s32 %s29, %s36
      %s113 = sor.u32 %s111, %s112
      %p114 = scmp.eq.s32.totalorder %s113, 0
      %s116 = sadd.s32 %s115, 1
      %s117 = scalar_select %p114, %s115, %s116
      %p120 = pneg %p114
      %p121 = scmp.eq.s32.totalorder %s21, 1
      %p122 = por %p120, %p121
      %p123 = scmp.ne.s32.totalorder %s115, %s118
      %p124 = scmp.eq.s32.totalorder %s21, 0
      %p125 = por %p123, %p124
      %p126 = scmp.ne.s32.totalorder %s115, %s118
      %p127 = scmp.eq.s32.totalorder %s26, 1
      %p128 = por %p126, %p127
      %p129 = scmp.ne.s32.totalorder %s118, %s119
      %p130 = scmp.eq.s32.totalorder %s26, 0
      %p131 = por %p129, %p130
      %p132 = scmp.ne.s32.totalorder %s118, %s119
      %p133 = scmp.eq.s32.totalorder %s27, 1
      %p134 = por %p132, %p133
      %p136 = scmp.ne.s32.totalorder %s119, %s135
      %p137 = scmp.eq.s32.totalorder %s27, 0
      %p138 = por %p136, %p137
      %s139 = ssub.s32 %s28, %s40
      %s140 = ssub.s32 %s29, %s36
      %s141 = sor.u32 %s139, %s140
      %p142 = scmp.eq.s32.totalorder %s141, 0
      %s144 = sadd.s32 %s143, 1
      %s145 = scalar_select %p142, %s143, %s144
      %p148 = pneg %p142
      %p149 = scmp.eq.s32.totalorder %s21, 1
      %p150 = por %p148, %p149
      %p151 = scmp.ne.s32.totalorder %s143, %s146
      %p152 = scmp.eq.s32.totalorder %s21, 0
      %p153 = por %p151, %p152
      %p154 = scmp.ne.s32.totalorder %s143, %s146
      %p155 = scmp.eq.s32.totalorder %s26, 1
      %p156 = por %p154, %p155
      %p157 = scmp.ne.s32.totalorder %s146, %s147
      %p158 = scmp.eq.s32.totalorder %s26, 0
      %p159 = por %p157, %p158
      %p160 = scmp.ne.s32.totalorder %s146, %s147
      %p161 = scmp.eq.s32.totalorder %s27, 1
      %p162 = por %p160, %p161
      %p164 = scmp.ne.s32.totalorder %s147, %s163
      %p165 = scmp.eq.s32.totalorder %s27, 0
      %p166 = por %p164, %p165
      %p167 = scmp.le.s32.totalorder 1, %s21
      %p168 = scmp.lt.s32.totalorder %s21, 3
      %p169 = pnand %p167, %p168
      %p170 = pneg %p169
      // Predicated region
      $region9: #{tpu_custom_call.1} parent=5 // pred_check
        _
      $region10: #{tpu_custom_call.1} parent=5 // pred_check_branch
        %172 = sbr.rel (%p169) target = $region12
      $region11: #{tpu_custom_call.1} parent=5 // pred_region
        %s173 = ssub.s32 %s21, 1
        // Predicated region
        $region13: #{tpu_custom_call.1} parent=11 // pred_check
          %p174 = pneg %p82
        $region14: #{tpu_custom_call.1} parent=11 // pred_check_branch
          %176 = sbr.rel (%p174) target = $region16
        $region15: #{tpu_custom_call.1} parent=11 // pred_region
          %s178 = ssub.s32 128, 128
          %179 = vsyncadd [#allocation6], %s178
          %s180 = sshll.u32 [#allocation5], 4
          %s181 = int_to_ptr.vmem [resolvable:$true] %s180
          %186 = dma.hbm_to_vmem [thread:$0]  %s1, 128, %s181, [#allocation6], 64, 64, 4
        $region16: #{tpu_custom_call.1} parent=11 // pred_fallthru
          _
        // Predicated region
        $region17: #{tpu_custom_call.1} parent=11 // pred_check
          %p187 = pneg %p103
        $region18: #{tpu_custom_call.1} parent=11 // pred_check_branch
          %189 = sbr.rel (%p187) target = $region20
        $region19: #{tpu_custom_call.1} parent=11 // pred_region
          %s191 = ssub.s32 128, 128
          %192 = vsyncadd [#allocation6], %s191
          %s193 = sshll.u32 [#allocation7], 4
          %s194 = int_to_ptr.vmem [resolvable:$true] %s193
          %199 = dma.hbm_to_vmem [thread:$0]  %s2, 128, %s194, [#allocation6], 64, 64, 4
        $region20: #{tpu_custom_call.1} parent=11 // pred_fallthru
          _
      $region12: #{tpu_custom_call.1} parent=5 // pred_fallthru
        _
      %p200 = scmp.lt.s32.totalorder %s21, 2
      // Predicated region
      $region21: #{tpu_custom_call.1} parent=5 // pred_check
        %p201 = pneg %p200
      $region22: #{tpu_custom_call.1} parent=5 // pred_check_branch
        %203 = sbr.rel (%p201) target = $region24
      $region23: #{tpu_custom_call.1} parent=5 // pred_region
        // Predicated region
        $region25: #{tpu_custom_call.1} parent=23 // pred_check
          %p204 = pneg %p55
        $region26: #{tpu_custom_call.1} parent=23 // pred_check_branch
          %206 = sbr.rel (%p204) target = $region28
        $region27: #{tpu_custom_call.1} parent=23 // pred_region
          %s207 = sand.u32 %s45, 1
          %s208 = scalar_lea.sflag [#allocation3], %s207
          %s209 = sand.u32 %s45, 1
          %s210 = smul.addr %s209, 16
          %s211 = scalar_lea.vmem [#allocation2], %s210
          %s212 = smul.u32 2, %s29
          %s214 = ssub.s32 256, 256
          %215 = vsyncadd %s208, %s214
          %s216 = smul.addr %s28, 2
          %s217 = sadd.s32 %s212, %s216
          %s218 = smul.addr %s217, 128
          %s219 = scalar_lea.hbm %s0, %s218
          %s220 = sshll.u32 %s211, 4
          %s221 = int_to_ptr.vmem [resolvable:$true] %s220
          %226 = dma.hbm_to_vmem [thread:$0]  %s219, 256, %s221, %s208, 128, 128, 8
        $region28: #{tpu_custom_call.1} parent=23 // pred_fallthru
          _
      $region24: #{tpu_custom_call.1} parent=5 // pred_fallthru
        _
      %p227 = scmp.le.s32.totalorder 1, %s21
      %p228 = scmp.lt.s32.totalorder %s21, 3
      %p229 = pnand %p227, %p228
      %p230 = pneg %p229
      // Predicated region
      $region29: #{tpu_custom_call.1} parent=5 // pred_check
        _
      $region30: #{tpu_custom_call.1} parent=5 // pred_check_branch
        %232 = sbr.rel (%p229) target = $region32
      $region31: #{tpu_custom_call.1} parent=5 // pred_region
        %s233 = ssub.s32 %s21, 1
        %s234 = sand.u32 %s48, 1
        %s235 = scalar_lea.sflag [#allocation3], %s234
        %s236 = sand.u32 %s48, 1
        %s237 = smul.addr %s236, 16
        %s238 = scalar_lea.vmem [#allocation2], %s237
        // Predicated region
        $region33: #{tpu_custom_call.1} parent=31 // pred_check
          %p239 = pneg %p61
        $region34: #{tpu_custom_call.1} parent=31 // pred_check_branch
          %241 = sbr.rel (%p239) target = $region36
        $region35: #{tpu_custom_call.1} parent=31 // pred_region
          %242 = dma.done %s235, 256
        $region36: #{tpu_custom_call.1} parent=31 // pred_fallthru
          _
        // Predicated region
        $region37: #{tpu_custom_call.1} parent=31 // pred_check
          %p243 = pneg %p82
        $region38: #{tpu_custom_call.1} parent=31 // pred_check_branch
          %245 = sbr.rel (%p243) target = $region40
        $region39: #{tpu_custom_call.1} parent=31 // pred_region
          %246 = dma.done [#allocation6], 128
        $region40: #{tpu_custom_call.1} parent=31 // pred_fallthru
          _
        // Predicated region
        $region41: #{tpu_custom_call.1} parent=31 // pred_check
          %p247 = pneg %p103
        $region42: #{tpu_custom_call.1} parent=31 // pred_check_branch
          %249 = sbr.rel (%p247) target = $region44
        $region43: #{tpu_custom_call.1} parent=31 // pred_region
          %250 = dma.done [#allocation6], 128
        $region44: #{tpu_custom_call.1} parent=31 // pred_fallthru
          _
        %s251 = sand.u32 %s48, 1
        %s252 = scalar_lea.sflag [#allocation3], %s251
        %s253 = sand.u32 %s48, 1
        %s254 = smul.addr %s253, 16
        %s255 = scalar_lea.vmem [#allocation2], %s254
        %p256 = pneg %p61
        %p257 = pneg %p58
        %p258 = pneg %p82
        %p259 = pneg %p79
        %p260 = pneg %p103
        %p261 = pneg %p100
        %p262 = pneg %p131
        %p263 = pneg %p128
        %s264 = sand.u32 %s118, 1
        %s265 = scalar_lea.sflag [#allocation4], %s264
        %s266 = sand.u32 %s118, 1
        %s267 = smul.addr %s266, 8
        %s268 = scalar_lea.vmem [#allocation8], %s267
        %p269 = pneg %p159
        %p270 = pneg %p156
        %s271 = sand.u32 %s146, 1
        %s272 = scalar_lea.sflag [#allocation10], %s271
        %s273 = sand.u32 %s146, 1
        %s274 = smul.addr %s273, 8
        %s275 = scalar_lea.vmem [#allocation9], %s274
        %s276 = smul.u32 2, %s31
        %s277 = smul.u32 2, %s31
        %s278 = smul.u32 2, %s31
        %v280 = vld [vmem:[%s238] sm:$0xff]
        %v281 = vld [vmem:[%s238 + $0x8] sm:$0xf]
        %v282 = vpack.c.bf16 %v281, %v280
        %v283 = vld [vmem:[#allocation5] sm:$0xf]
        %v284 = vld [vmem:[#allocation5 + $0x4] sm:$0xf]
        %v287 = vunpack.c.l.b16 %v283
        %v288 = vunpack.c.l.b16 %v284
        %v289 = vpack.c.b16 %v288, %v287
        %vm291 = vcmask 130048
        %v293 = vsel %vm291, %v282, 0
        %295 = vmatprep.subr.bf16.mxu0 0
        %296 = vmatpush1.bf16.msra.mxu0 %v289
        %297 = vmatprep.subr.bf16.mxu0 0
        %298 = vmatpush1.bf16.msra.mxu0 0
        %299 = vmatprep.subr.bf16.mxu0 0
        %300 = vmatpush1.bf16.msra.mxu0 0
        %301 = vmatprep.subr.bf16.mxu0 0
        %302 = vmatpush1.bf16.msra.mxu0 0
        %303 = vmatprep.subr.bf16.mxu0 0
        %304 = vmatpush1.bf16.msra.mxu0 0
        %305 = vmatprep.subr.bf16.mxu0 0
        %306 = vmatpush1.bf16.msra.mxu0 0
        %307 = vmatprep.subr.bf16.mxu0 0
        %308 = vmatpush1.bf16.msra.mxu0 0
        %309 = vmatprep.subr.bf16.mxu0 0
        %310 = vmatpush1.bf16.msra.mxu0 0
        %311 = vmatprep.subr.bf16.mxu0 0
        %312 = vmatpush1.bf16.msra.mxu0 0
        %313 = vmatprep.subr.bf16.mxu0 0
        %314 = vmatpush1.bf16.msra.mxu0 0
        %315 = vmatprep.subr.bf16.mxu0 0
        %316 = vmatpush1.bf16.msra.mxu0 0
        %317 = vmatprep.subr.bf16.mxu0 0
        %318 = vmatpush1.bf16.msra.mxu0 0
        %319 = vmatprep.subr.bf16.mxu0 0
        %320 = vmatpush1.bf16.msra.mxu0 0
        %321 = vmatprep.subr.bf16.mxu0 0
        %322 = vmatpush1.bf16.msra.mxu0 0
        %323 = vmatprep.subr.bf16.mxu0 0
        %324 = vmatpush1.bf16.msra.mxu0 0
        %325 = vmatprep.subr.bf16.mxu0 0
        %326 = vmatpush1.bf16.msra.mxu0 0
        %327 = vmatprep.mubr.bf16.mxu0 0
        %328 = vmatmul.mubr.bf16.gmra.mrb[0].mxu0 %v293
        %v329 = vpop.f32.mrb[0].mxu0
        %v330 = vadd.f32 0.0, %v329
        %v331 = vpop.f32.mrb[0].mxu0
        %v332 = vpop.f32.mrb[0].mxu0
        %v333 = vadd.f32 0.0, %v332
        %v334 = vpop.f32.mrb[0].mxu0
        %335 = vdwg.mxu0
        %v336 = vpack.c.bf16 %v333, %v330
        %v338 = vunpack.c.l.b16 %v336
        %v339 = vunpack.c.h.b16 %v336
        %v340 = vpack.c.b16 %v338, %v338
        %v341 = vpack.c.b16 %v339, %v339
        %vm344 = vcmask 257024
        %345 = vst.msk [vmem:[%s268] sm:$0xf] %vm344, %v340
        %vm346 = vcmask 254976
        %347 = vst.msk [vmem:[%s268 + $0x4] sm:$0x3] %vm346, %v341
        %v348 = vld [vmem:[#allocation7] sm:$0xf]
        %v349 = vld [vmem:[#allocation7 + $0x4] sm:$0xf]
        %v352 = vunpack.c.l.b16 %v348
        %v353 = vunpack.c.l.b16 %v349
        %v354 = vpack.c.b16 %v353, %v352
        %356 = vmatprep.subr.bf16.mxu0 0
        %357 = vmatpush1.bf16.msra.mxu0 %v354
        %358 = vmatprep.subr.bf16.mxu0 0
        %359 = vmatpush1.bf16.msra.mxu0 0
        %360 = vmatprep.subr.bf16.mxu0 0
        %361 = vmatpush1.bf16.msra.mxu0 0
        %362 = vmatprep.subr.bf16.mxu0 0
        %363 = vmatpush1.bf16.msra.mxu0 0
        %364 = vmatprep.subr.bf16.mxu0 0
        %365 = vmatpush1.bf16.msra.mxu0 0
        %366 = vmatprep.subr.bf16.mxu0 0
        %367 = vmatpush1.bf16.msra.mxu0 0
        %368 = vmatprep.subr.bf16.mxu0 0
        %369 = vmatpush1.bf16.msra.mxu0 0
        %370 = vmatprep.subr.bf16.mxu0 0
        %371 = vmatpush1.bf16.msra.mxu0 0
        %372 = vmatprep.subr.bf16.mxu0 0
        %373 = vmatpush1.bf16.msra.mxu0 0
        %374 = vmatprep.subr.bf16.mxu0 0
        %375 = vmatpush1.bf16.msra.mxu0 0
        %376 = vmatprep.subr.bf16.mxu0 0
        %377 = vmatpush1.bf16.msra.mxu0 0
        %378 = vmatprep.subr.bf16.mxu0 0
        %379 = vmatpush1.bf16.msra.mxu0 0
        %380 = vmatprep.subr.bf16.mxu0 0
        %381 = vmatpush1.bf16.msra.mxu0 0
        %382 = vmatprep.subr.bf16.mxu0 0
        %383 = vmatpush1.bf16.msra.mxu0 0
        %384 = vmatprep.subr.bf16.mxu0 0
        %385 = vmatpush1.bf16.msra.mxu0 0
        %386 = vmatprep.subr.bf16.mxu0 0
        %387 = vmatpush1.bf16.msra.mxu0 0
        %388 = vmatprep.mubr.bf16.mxu0 0
        %389 = vmatmul.mubr.bf16.gmra.mrb[0].mxu0 %v293
        %v390 = vpop.f32.mrb[0].mxu0
        %v391 = vadd.f32 0.0, %v390
        %v392 = vpop.f32.mrb[0].mxu0
        %v393 = vpop.f32.mrb[0].mxu0
        %v394 = vadd.f32 0.0, %v393
        %v395 = vpop.f32.mrb[0].mxu0
        %396 = vdwg.mxu0
        %v397 = vpack.c.bf16 %v394, %v391
        %v399 = vunpack.c.l.b16 %v397
        %v400 = vunpack.c.h.b16 %v397
        %v401 = vpack.c.b16 %v399, %v399
        %v402 = vpack.c.b16 %v400, %v400
        %405 = vst.msk [vmem:[%s275] sm:$0xf] %vm344, %v401
        %406 = vst.msk [vmem:[%s275 + $0x4] sm:$0x3] %vm346, %v402
        %s407 = sand.u32 %s118, 1
        %s408 = scalar_lea.sflag [#allocation4], %s407
        %s409 = sand.u32 %s118, 1
        %s410 = smul.addr %s409, 8
        %s411 = scalar_lea.vmem [#allocation8], %s410
        %s412 = sand.u32 %s146, 1
        %s413 = scalar_lea.sflag [#allocation10], %s412
        %s414 = sand.u32 %s146, 1
        %s415 = smul.addr %s414, 8
        %s416 = scalar_lea.vmem [#allocation9], %s415
        // Predicated region
        $region45: #{tpu_custom_call.1} parent=31 // pred_check
          %p417 = pneg %p128
        $region46: #{tpu_custom_call.1} parent=31 // pred_check_branch
          %419 = sbr.rel (%p417) target = $region48
        $region47: #{tpu_custom_call.1} parent=31 // pred_region
          %s420 = smul.u32 2, %s31
          %s422 = ssub.s32 128, 128
          %423 = vsyncadd %s408, %s422
          %s424 = smul.addr %s30, 2
          %s425 = sadd.s32 %s420, %s424
          %s426 = smul.addr %s425, 64
          %s427 = scalar_lea.hbm %s3, %s426
          %s428 = sshll.u32 %s411, 4
          %s429 = int_to_ptr.vmem [resolvable:$true] %s428
          %434 = dma.vmem_to_hbm [thread:$0]  %s429, 128, %s427, %s408, 64, 64, 4
        $region48: #{tpu_custom_call.1} parent=31 // pred_fallthru
          _
        // Predicated region
        $region49: #{tpu_custom_call.1} parent=31 // pred_check
          %p435 = pneg %p156
        $region50: #{tpu_custom_call.1} parent=31 // pred_check_branch
          %437 = sbr.rel (%p435) target = $region52
        $region51: #{tpu_custom_call.1} parent=31 // pred_region
          %s438 = smul.u32 2, %s31
          %s440 = ssub.s32 128, 128
          %441 = vsyncadd %s413, %s440
          %s442 = smul.addr %s30, 2
          %s443 = sadd.s32 %s438, %s442
          %s444 = smul.addr %s443, 64
          %s445 = scalar_lea.hbm %s4, %s444
          %s446 = sshll.u32 %s416, 4
          %s447 = int_to_ptr.vmem [resolvable:$true] %s446
          %452 = dma.vmem_to_hbm [thread:$0]  %s447, 128, %s445, %s413, 64, 64, 4
        $region52: #{tpu_custom_call.1} parent=31 // pred_fallthru
          _
      $region32: #{tpu_custom_call.1} parent=5 // pred_fallthru
        _
      %p453 = scmp.le.s32.totalorder 2, %s21
      // Predicated region
      $region53: #{tpu_custom_call.1} parent=5 // pred_check
        %p454 = pneg %p453
      $region54: #{tpu_custom_call.1} parent=5 // pred_check_branch
        %456 = sbr.rel (%p454) target = $region56
      $region55: #{tpu_custom_call.1} parent=5 // pred_region
        %s457 = ssub.s32 %s21, 2
        // Predicated region
        $region57: #{tpu_custom_call.1} parent=55 // pred_check
          %p458 = pneg %p134
        $region58: #{tpu_custom_call.1} parent=55 // pred_check_branch
          %460 = sbr.rel (%p458) target = $region60
        $region59: #{tpu_custom_call.1} parent=55 // pred_region
          %s461 = sand.u32 %s119, 1
          %s462 = scalar_lea.sflag [#allocation4], %s461
          %s463 = sand.u32 %s119, 1
          %s464 = smul.addr %s463, 8
          %s465 = scalar_lea.vmem [#allocation8], %s464
          %466 = dma.done %s462, 128
        $region60: #{tpu_custom_call.1} parent=55 // pred_fallthru
          _
        // Predicated region
        $region61: #{tpu_custom_call.1} parent=55 // pred_check
          %p467 = pneg %p162
        $region62: #{tpu_custom_call.1} parent=55 // pred_check_branch
          %469 = sbr.rel (%p467) target = $region64
        $region63: #{tpu_custom_call.1} parent=55 // pred_region
          %s470 = sand.u32 %s147, 1
          %s471 = scalar_lea.sflag [#allocation10], %s470
          %s472 = sand.u32 %s147, 1
          %s473 = smul.addr %s472, 8
          %s474 = scalar_lea.vmem [#allocation9], %s473
          %475 = dma.done %s471, 128
        $region64: #{tpu_custom_call.1} parent=55 // pred_fallthru
          _
      $region56: #{tpu_custom_call.1} parent=5 // pred_fallthru
        _
    $region6: #{tpu_custom_call.1} parent=1 // loop_footer
      %s25 = sadd.s32 1, %s21
    $region7: #{tpu_custom_call.1} parent=1 // loop_footer_branch
      %20 = sbr.rel target = $region3
    $region8: #{tpu_custom_call.1} parent=1 // loop_exit
      _
    %476 = vsyncpa [#allocation3], 1
    %s477 = scalar_lea.sflag [#allocation3], 1
    %478 = vsyncpa %s477, 1
    %479 = vsyncpa [#allocation6], 1
    %480 = vsyncpa [#allocation4], 1
    %s481 = scalar_lea.sflag [#allocation4], 1
    %482 = vsyncpa %s481, 1
    %483 = vsyncpa [#allocation10], 1
    %s484 = scalar_lea.sflag [#allocation10], 1
    %485 = vsyncpa %s484, 1

</llo_original>
